<compile_context>
chip_gen: v5e
topology: v5e:2x2
jax: 0.10.0
libtpu: 0.0.40
codegen_flags: <defaults>
</compile_context>

<pallas_src>
import math

import jax
import jax.numpy as jnp
from jax import lax
from jax.experimental import pallas as pl
from jax.experimental.pallas import tpu as pltpu


NEG_INF = -1e30  # large finite negative: avoids (-inf) - (-inf) = NaN hazards


def _pick_tile(dim, cap):
    """Largest tile <= cap that divides dim and respects (8,128) alignment."""
    if dim <= cap:
        return dim
    for align in (128, 8):
        t = (cap // align) * align
        while t >= align:
            if dim % t == 0:
                return t
            t -= align
    return dim  # fallback: no tiling


def _vmem_limit_bytes():
    """Explicit scoped-VMEM cap (defaults are 16/32 MiB and too small)."""
    try:
        cap = int(pltpu.get_tpu_info().vmem_capacity_bytes)
        return max(32 * 1024 * 1024, min(int(cap * 0.85), 112 * 1024 * 1024))
    except Exception:
        return 64 * 1024 * 1024


# ---------------------------------------------------------------------------
# Kernel 1: fused Q/K/V projection, weight streamed over the K (=H) axis
# ---------------------------------------------------------------------------
def _make_qkv_kernel(H, compute_dtype):
    def qkv_kernel(x_ref, w_ref, b_ref, q_ref, k_ref, v_ref, acc_ref):
        kk = pl.program_id(2)

        @pl.when(kk == 0)
        def _init():
            acc_ref[...] = jnp.zeros_like(acc_ref)

        x = x_ref[...].astype(compute_dtype)                 # (tm, tkr)
        acc_ref[...] += jnp.dot(x, w_ref[...],               # (tkr, 3H)
                                preferred_element_type=jnp.float32)

        @pl.when(kk == pl.num_programs(2) - 1)
        def _finalize():
            y = acc_ref[...] + b_ref[...]                    # (tm, 3H) f32
            q_ref[...] = y[:, 0:H].astype(q_ref.dtype)
            k_ref[...] = y[:, H:2 * H].astype(k_ref.dtype)
            v_ref[...] = y[:, 2 * H:3 * H].astype(v_ref.dtype)

    return qkv_kernel


def qkv_projections(x, wq, bq, wk, bk, wv, bv, num_heads,
                    compute_dtype=jnp.bfloat16, tm=None, tkr=None):
    B, T, H = x.shape
    D = H // num_heads
    scale = 1.0 / math.sqrt(D)
    is_bf16 = jnp.dtype(compute_dtype) == jnp.dtype(jnp.bfloat16)

    if tm is None:
        tm = _pick_tile(T, 512 if is_bf16 else 256)
    if tkr is None:
        tkr = _pick_tile(H, 512)
    assert T % tm == 0 and H % tkr == 0

    # Fuse + pre-transpose weights once at trace time (layout plumbing); fold
    # the 1/sqrt(D) attention scale into the query projection so the attention
    # kernel never scales the (tq, tk) score tile.
    w_fused = jnp.concatenate([wq.T * scale, wk.T, wv.T], axis=1).astype(compute_dtype)
    b_fused = jnp.concatenate([bq * scale, bk, bv]).reshape(1, 3 * H).astype(jnp.float32)

    x_spec = pl.BlockSpec((None, tm, tkr), lambda b, i, k: (b, i, k))
    w_spec = pl.BlockSpec((tkr, 3 * H), lambda b, i, k: (k, 0))
    b_spec = pl.BlockSpec((1, 3 * H), lambda b, i, k: (0, 0))
    out_spec = pl.BlockSpec((None, tm, H), lambda b, i, k: (b, i, 0))
    out_shape = jax.ShapeDtypeStruct((B, T, H), compute_dtype)

    q, k, v = pl.pallas_call(
        _make_qkv_kernel(H, compute_dtype),
        out_shape=(out_shape, out_shape, out_shape),
        grid_spec=pltpu.PrefetchScalarGridSpec(
            num_scalar_prefetch=0,
            grid=(B, T // tm, H // tkr),          # reduction (K) axis last
            in_specs=[x_spec, w_spec, b_spec],
            out_specs=[out_spec, out_spec, out_spec],
            scratch_shapes=[pltpu.VMEM((tm, 3 * H), jnp.float32)],
        ),
        compiler_params=pltpu.CompilerParams(
            dimension_semantics=("parallel", "parallel", "arbitrary"),
            vmem_limit_bytes=_vmem_limit_bytes()),
    )(x, w_fused, b_fused)
    return q, k, v


# ---------------------------------------------------------------------------
# Kernel 2: flash-style causal attention, [B, T, H] layout, heads in-kernel
# ---------------------------------------------------------------------------
def _make_attn_kernel(num_heads, D, H, tq, tk, compute_dtype, out_dtype):
    approx_recip = jnp.dtype(compute_dtype) != jnp.dtype(jnp.float32)

    def attn_kernel(q_ref, k_ref, v_ref, amask_ref, o_ref, m_scr, l_scr, acc_scr):
        qi = pl.program_id(1)
        kv = pl.program_id(2)
        # index of the last kv tile that intersects the causal region of qi
        kv_last = ((qi + 1) * tq - 1) // tk

        @pl.when(kv <= kv_last)
        def _compute():
            @pl.when(kv == 0)
            def _init():
                m_scr[...] = jnp.full(m_scr.shape, NEG_INF, jnp.float32)
                l_scr[...] = jnp.zeros(l_scr.shape, jnp.float32)
                acc_scr[...] = jnp.zeros(acc_scr.shape, jnp.float32)

            amask = amask_ref[...].astype(jnp.float32)               # (1, tk)
            # global-index causal mask (valid for any tq/tk); fused with the
            # additive attention mask in a single select
            row = lax.broadcasted_iota(jnp.int32, (tq, tk), 0) + qi * tq
            col = lax.broadcasted_iota(jnp.int32, (tq, tk), 1) + kv * tk
            keep = col <= row

            for h in range(num_heads):
                qh = q_ref[:, h * D:(h + 1) * D]     # (tq, D), scale pre-folded
                kh = k_ref[:, h * D:(h + 1) * D]     # (tk, D)
                vh = v_ref[:, h * D:(h + 1) * D]     # (tk, D)
                # Q . K^T via dot_general (contract last dims) -> no transpose
                s = lax.dot_general(qh, kh, (((1,), (1,)), ((), ())),
                                    preferred_element_type=jnp.float32)  # (tq, tk)
                s = jnp.where(keep, s + amask, NEG_INF)

                m_prev = m_scr[:, h:h + 1]                       # (tq, 1)
                m_new = jnp.maximum(m_prev, jnp.max(s, axis=-1, keepdims=True))
                alpha = jnp.exp(m_prev - m_new)
                p = jnp.exp(s - m_new)                           # (tq, tk) f32
                l_scr[:, h:h + 1] = (alpha * l_scr[:, h:h + 1]
                                     + jnp.sum(p, axis=-1, keepdims=True))
                acc_scr[:, h * D:(h + 1) * D] = (
                    alpha * acc_scr[:, h * D:(h + 1) * D]
                    + jnp.dot(p.astype(compute_dtype), vh,
                              preferred_element_type=jnp.float32))
                m_scr[:, h:h + 1] = m_new

        @pl.when(kv == kv_last)
        def _finalize():
            # normalize in place (per-head EUP reciprocal), then ONE lane-dense
            # (tq, H) store -- no per-head concatenate
            for h in range(num_heads):
                inv_l = pl.reciprocal(l_scr[:, h:h + 1], approx=approx_recip)
                acc_scr[:, h * D:(h + 1) * D] = acc_scr[:, h * D:(h + 1) * D] * inv_l
            o_ref[...] = acc_scr[...].astype(out_dtype)

    return attn_kernel


def attention(q, k, v, attention_mask, num_heads,
              compute_dtype=None, out_dtype=jnp.float32, tq=None, tk=None):
    # q, k, v: [B, T, H] (heads packed on the H axis); attention_mask: [B,1,1,T]
    B, T, H = q.shape
    D = H // num_heads
    if compute_dtype is None:
        compute_dtype = q.dtype
    is_bf16 = jnp.dtype(compute_dtype) == jnp.dtype(jnp.bfloat16)

    if tq is None:
        tq = _pick_tile(T, 256 if is_bf16 else 128)   # 256 feeds the 2x256 MXU
    if tk is None:
        tk = tq
    assert T % tq == 0 and T % tk == 0

    def kv_last_of(qi):
        return ((qi + 1) * tq - 1) // tk

    q_spec = pl.BlockSpec((None, tq, H), lambda b, qi, kv: (b, qi, 0))
    # Clamp K/V (and mask) block indices to the causal range: tiles above the
    # diagonal keep the previous block index, so the pipeline never DMAs them.
    kv_spec = pl.BlockSpec((None, tk, H),
                           lambda b, qi, kv: (b, jnp.minimum(kv, kv_last_of(qi)), 0))
    m_spec = pl.BlockSpec((None, None, 1, tk),
                          lambda b, qi, kv: (b, 0, 0, jnp.minimum(kv, kv_last_of(qi))))
    o_spec = pl.BlockSpec((None, tq, H), lambda b, qi, kv: (b, qi, 0))

    return pl.pallas_call(
        _make_attn_kernel(num_heads, D, H, tq, tk, compute_dtype, out_dtype),
        out_shape=jax.ShapeDtypeStruct((B, T, H), out_dtype),
        grid_spec=pltpu.PrefetchScalarGridSpec(
            num_scalar_prefetch=0,
            grid=(B, T // tq, T // tk),
            in_specs=[q_spec, kv_spec, kv_spec, m_spec],
            out_specs=o_spec,
            scratch_shapes=[
                pltpu.VMEM((tq, num_heads), jnp.float32),   # running max  m
                pltpu.VMEM((tq, num_heads), jnp.float32),   # running sum  l
                pltpu.VMEM((tq, H), jnp.float32),           # lane-dense accumulator
            ],
        ),
        compiler_params=pltpu.CompilerParams(
            dimension_semantics=("parallel", "parallel", "arbitrary"),
            vmem_limit_bytes=_vmem_limit_bytes()),
    )(q, k, v, attention_mask)


# ---------------------------------------------------------------------------
# Module-level forward (no head-split transposes; [B, T, H] end-to-end)
# ---------------------------------------------------------------------------
def causal_self_attention(hidden_states, attention_mask, params, num_heads,
                          compute_dtype=jnp.bfloat16):
    q, k, v = qkv_projections(hidden_states,
                              params["wq"], params["bq"],
                              params["wk"], params["bk"],
                              params["wv"], params["bv"],
                              num_heads, compute_dtype=compute_dtype)
    return attention(q, k, v, attention_mask, num_heads,
                     compute_dtype=compute_dtype,
                     out_dtype=hidden_states.dtype)


# ---------------------------------------------------------------------------
# Pure-JAX reference for verification
# ---------------------------------------------------------------------------
def reference(hidden_states, attention_mask, params, num_heads):
    B, T, H = hidden_states.shape
    D = H // num_heads

    def lin(x, w, b):
        return x @ w.T + b

    def split_heads(x):
        return jnp.transpose(x.reshape(B, T, num_heads, D), (0, 2, 1, 3))

    q = split_heads(lin(hidden_states, params["wq"], params["bq"]))
    k = split_heads(lin(hidden_states, params["wk"], params["bk"]))
    v = split_heads(lin(hidden_states, params["wv"], params["bv"]))
    s = jnp.einsum("bhqd,bhkd->bhqk", q, k) / math.sqrt(D)
    causal = jnp.tril(jnp.ones((T, T)))[None, None]
    s = jnp.where(causal == 0, -jnp.inf, s)
    s = s + attention_mask
    w = jax.nn.softmax(s, axis=-1)
    o = jnp.einsum("bhqk,bhkd->bhqd", w, v)
    return jnp.transpose(o, (0, 2, 1, 3)).reshape(B, T, H)


if __name__ == "__main__":
    B, T, H, nH = 2, 8, 32, 4

    key = jax.random.PRNGKey(0)
    ks = jax.random.split(key, 8)
    scale = 1.0 / math.sqrt(H)
    params = {
        "wq": jax.random.uniform(ks[0], (H, H), jnp.float32, -scale, scale),
        "bq": jax.random.uniform(ks[1], (H,), jnp.float32, -scale, scale),
        "wk": jax.random.uniform(ks[2], (H, H), jnp.float32, -scale, scale),
        "bk": jax.random.uniform(ks[3], (H,), jnp.float32, -scale, scale),
        "wv": jax.random.uniform(ks[4], (H, H), jnp.float32, -scale, scale),
        "bv": jax.random.uniform(ks[5], (H,), jnp.float32, -scale, scale),
    }

    hidden_states = jax.random.normal(ks[6], (B, T, H), jnp.float32)
    # additive attention mask: 0 for kept positions, -10000 for padded ones
    pad = (jax.random.uniform(ks[7], (B, 1, 1, T)) < 0.2).astype(jnp.float32)
    attention_mask = pad * -10000.0

    ref = reference(hidden_states, attention_mask, params, nH)

    # f32 path: tight tolerance vs f32 reference
    out_f32 = causal_self_attention(hidden_states, attention_mask, params, nH,
                                    compute_dtype=jnp.float32)
    out_f32 = jax.block_until_ready(out_f32)
    assert out_f32.shape == (B, T, H)
    assert jnp.allclose(out_f32, ref, atol=1e-4, rtol=1e-4), "f32 mismatch vs reference"

    # production default (bf16 MXU operands, f32 accumulation): loose tolerance
    out_bf16 = causal_self_attention(hidden_states, attention_mask, params, nH)
    out_bf16 = jax.block_until_ready(out_bf16)
    assert out_bf16.shape == (B, T, H)
    assert jnp.allclose(out_bf16, ref, atol=5e-2, rtol=5e-2), "bf16 mismatch vs reference"

    print("KERNEL_OK")
</pallas_src>

<mosaic_0001>
module attributes {stable_mosaic.version = 11 : i64} {
  func.func @qkv_kernel(%arg0: i32, %arg1: i32, %arg2: i32, %arg3: memref<1x8x32xf32, #tpu.memory_space<vmem>>, %arg4: memref<32x96xf32, #tpu.memory_space<vmem>>, %arg5: memref<1x96xf32, #tpu.memory_space<vmem>>, %arg6: memref<1x8x32xf32, #tpu.memory_space<vmem>>, %arg7: memref<1x8x32xf32, #tpu.memory_space<vmem>>, %arg8: memref<1x8x32xf32, #tpu.memory_space<vmem>>, %arg9: memref<8x96xf32, #tpu.memory_space<vmem>>) attributes {dimension_semantics = [#tpu.dimension_semantics<parallel>, #tpu.dimension_semantics<parallel>, #tpu.dimension_semantics<arbitrary>], iteration_bounds = array<i64: 2, 1, 1>, scalar_prefetch = 0 : i64, scratch_operands = 1 : i64, tpu.core_type = #tpu.core_type<tc>, window_params = [{transform_indices = @transform_0, window_bounds = array<i64: 1, 8, 32>}, {transform_indices = @transform_1, window_bounds = array<i64: 32, 96>}, {pipeline_mode = #tpu.pipeline_mode<synchronous>, transform_indices = @transform_2, window_bounds = array<i64: 1, 96>}, {transform_indices = @transform_3, window_bounds = array<i64: 1, 8, 32>}, {transform_indices = @transform_4, window_bounds = array<i64: 1, 8, 32>}, {transform_indices = @transform_5, window_bounds = array<i64: 1, 8, 32>}]} {
    %c0_i32 = arith.constant 0 : i32
    %0 = arith.cmpi eq, %arg2, %c0_i32 : i32
    %1 = arith.extui %0 : i1 to i32
    %c0_i32_0 = arith.constant 0 : i32
    %2 = arith.cmpi ne, %1, %c0_i32_0 : i32
    scf.if %2 {
      %cst_11 = arith.constant 0.000000e+00 : f32
      %13 = vector.broadcast %cst_11 : f32 to vector<8x96xf32>
      %c0_12 = arith.constant 0 : index
      %c0_13 = arith.constant 0 : index
      %14 = vector.load %arg9[%c0_12, %c0_13] : memref<8x96xf32, #tpu.memory_space<vmem>>, vector<8x96xf32>
      tpu.vector_store %arg9[%c0_12, %c0_13], %13 {strides = array<i32>} : memref<8x96xf32, #tpu.memory_space<vmem>>, vector<8x96xf32>,
    } else {
    }
    %c0 = arith.constant 0 : index
    %c0_1 = arith.constant 0 : index
    %c0_2 = arith.constant 0 : index
    %3 = vector.load %arg3[%c0, %c0_1, %c0_2] : memref<1x8x32xf32, #tpu.memory_space<vmem>>, vector<1x8x32xf32>
    %4 = vector.shape_cast %3 : vector<1x8x32xf32> to vector<8x32xf32>
    %c0_3 = arith.constant 0 : index
    %c0_4 = arith.constant 0 : index
    %5 = vector.load %arg9[%c0_3, %c0_4] : memref<8x96xf32, #tpu.memory_space<vmem>>, vector<8x96xf32>
    %c0_5 = arith.constant 0 : index
    %c0_6 = arith.constant 0 : index
    %6 = vector.load %arg4[%c0_5, %c0_6] : memref<32x96xf32, #tpu.memory_space<vmem>>, vector<32x96xf32>
    %cst = arith.constant dense<0.000000e+00> : vector<8x96xf32>
    %7 = tpu.matmul %4, %6, %cst {dimension_numbers = #tpu.dot_dimension_numbers<[1], [0], [0], [1], [0, 0, 1, 1], [], []>} : vector<8x32xf32>, vector<32x96xf32>, vector<8x96xf32> -> vector<8x96xf32>
    %8 = arith.addf %5, %7 : vector<8x96xf32>
    %c0_7 = arith.constant 0 : index
    %c0_8 = arith.constant 0 : index
    %9 = vector.load %arg9[%c0_7, %c0_8] : memref<8x96xf32, #tpu.memory_space<vmem>>, vector<8x96xf32>
    tpu.vector_store %arg9[%c0_7, %c0_8], %8 {strides = array<i32>} : memref<8x96xf32, #tpu.memory_space<vmem>>, vector<8x96xf32>,
    %c0_i32_9 = arith.constant 0 : i32
    %10 = arith.cmpi eq, %arg2, %c0_i32_9 : i32
    %11 = arith.extui %10 : i1 to i32
    %c0_i32_10 = arith.constant 0 : i32
    %12 = arith.cmpi ne, %11, %c0_i32_10 : i32
    scf.if %12 {
      %c0_11 = arith.constant 0 : index
      %c0_12 = arith.constant 0 : index
      %13 = vector.load %arg9[%c0_11, %c0_12] : memref<8x96xf32, #tpu.memory_space<vmem>>, vector<8x96xf32>
      %c0_13 = arith.constant 0 : index
      %c0_14 = arith.constant 0 : index
      %14 = vector.load %arg5[%c0_13, %c0_14] : memref<1x96xf32, #tpu.memory_space<vmem>>, vector<1x96xf32>
      %15 = vector.broadcast %14 : vector<1x96xf32> to vector<8x96xf32>
      %16 = arith.addf %13, %15 : vector<8x96xf32>
      %17 = vector.extract_strided_slice %16 {offsets = [0, 0], sizes = [8, 32], strides = [1, 1]} : vector<8x96xf32> to vector<8x32xf32>
      %c0_15 = arith.constant 0 : index
      %c0_16 = arith.constant 0 : index
      %c0_17 = arith.constant 0 : index
      %18 = vector.load %arg6[%c0_15, %c0_16, %c0_17] : memref<1x8x32xf32, #tpu.memory_space<vmem>>, vector<1x8x32xf32>
      %19 = vector.shape_cast %18 : vector<1x8x32xf32> to vector<8x32xf32>
      %20 = vector.shape_cast %17 : vector<8x32xf32> to vector<1x8x32xf32>
      tpu.vector_store %arg6[%c0_15, %c0_16, %c0_17], %20 {strides = array<i32>} : memref<1x8x32xf32, #tpu.memory_space<vmem>>, vector<1x8x32xf32>,
      %21 = vector.extract_strided_slice %16 {offsets = [0, 32], sizes = [8, 32], strides = [1, 1]} : vector<8x96xf32> to vector<8x32xf32>
      %c0_18 = arith.constant 0 : index
      %c0_19 = arith.constant 0 : index
      %c0_20 = arith.constant 0 : index
      %22 = vector.load %arg7[%c0_18, %c0_19, %c0_20] : memref<1x8x32xf32, #tpu.memory_space<vmem>>, vector<1x8x32xf32>
      %23 = vector.shape_cast %22 : vector<1x8x32xf32> to vector<8x32xf32>
      %24 = vector.shape_cast %21 : vector<8x32xf32> to vector<1x8x32xf32>
      tpu.vector_store %arg7[%c0_18, %c0_19, %c0_20], %24 {strides = array<i32>} : memref<1x8x32xf32, #tpu.memory_space<vmem>>, vector<1x8x32xf32>,
      %25 = vector.extract_strided_slice %16 {offsets = [0, 64], sizes = [8, 32], strides = [1, 1]} : vector<8x96xf32> to vector<8x32xf32>
      %c0_21 = arith.constant 0 : index
      %c0_22 = arith.constant 0 : index
      %c0_23 = arith.constant 0 : index
      %26 = vector.load %arg8[%c0_21, %c0_22, %c0_23] : memref<1x8x32xf32, #tpu.memory_space<vmem>>, vector<1x8x32xf32>
      %27 = vector.shape_cast %26 : vector<1x8x32xf32> to vector<8x32xf32>
      %28 = vector.shape_cast %25 : vector<8x32xf32> to vector<1x8x32xf32>
      tpu.vector_store %arg8[%c0_21, %c0_22, %c0_23], %28 {strides = array<i32>} : memref<1x8x32xf32, #tpu.memory_space<vmem>>, vector<1x8x32xf32>,
    } else {
    }
    return
  }
  func.func @transform_0(%arg0: i32, %arg1: i32, %arg2: i32) -> (i32, i32, i32) {
    %c0_i32 = arith.constant 0 : i32
    return %arg0, %arg1, %arg2 : i32, i32, i32
  }
  func.func @transform_1(%arg0: i32, %arg1: i32, %arg2: i32) -> (i32, i32) {
    %c0_i32 = arith.constant 0 : i32
    %c0_i32_0 = arith.constant 0 : i32
    return %arg2, %c0_i32 : i32, i32
  }
  func.func @transform_2(%arg0: i32, %arg1: i32, %arg2: i32) -> (i32, i32) {
    %c0_i32 = arith.constant 0 : i32
    %c0_i32_0 = arith.constant 0 : i32
    %c0_i32_1 = arith.constant 0 : i32
    return %c0_i32, %c0_i32_0 : i32, i32
  }
  func.func @transform_3(%arg0: i32, %arg1: i32, %arg2: i32) -> (i32, i32, i32) {
    %c0_i32 = arith.constant 0 : i32
    %c0_i32_0 = arith.constant 0 : i32
    return %arg0, %arg1, %c0_i32 : i32, i32, i32
  }
  func.func @transform_4(%arg0: i32, %arg1: i32, %arg2: i32) -> (i32, i32, i32) {
    %c0_i32 = arith.constant 0 : i32
    %c0_i32_0 = arith.constant 0 : i32
    return %arg0, %arg1, %c0_i32 : i32, i32, i32
  }
  func.func @transform_5(%arg0: i32, %arg1: i32, %arg2: i32) -> (i32, i32, i32) {
    %c0_i32 = arith.constant 0 : i32
    %c0_i32_0 = arith.constant 0 : i32
    return %arg0, %arg1, %c0_i32 : i32, i32, i32
  }
}

</mosaic_0001>

<llo_original>
// kernel: tpu_custom_call.1
$region0: #{tpu_custom_call.1}
  #allocation0 [shape = 'u32[]', space=smem, size = 0x4, offset = 0x4, fixed_abs, tag = 'smem constant byte address 0x4 - core index']
  #allocation1 [shape = 'u32[72,128]{1,0:T(1,128)}', space=vmem, size = 0x9000, scoped, tag = 'internal scratch']
  #allocation2 [shape = 'f32[8,96]{1,0:T(8,128)}', space=vmem, size = 0x1000, scoped, tag = 'scratch operand']
  %s0 = inlined_call_operand.hbm [shape: f32[2,8,32], index: 0, kind: input, shape index: {}]
  %s1 = inlined_call_operand.hbm [shape: f32[32,96], index: 1, kind: input, shape index: {}]
  %s2 = inlined_call_operand.vmem [shape: f32[1,96], index: 2, kind: input, shape index: {}]
  %s3 = inlined_call_operand.hbm [shape: f32[2,8,32], index: 3, kind: output, shape index: {0}]
  %s4 = inlined_call_operand.hbm [shape: f32[2,8,32], index: 4, kind: output, shape index: {1}]
  %s5 = inlined_call_operand.hbm [shape: f32[2,8,32], index: 5, kind: output, shape index: {2}]
  %6 = xla_tuple %s3, %s4, %s5
  %s7 = sld [smem:[#allocation0]]
  $region77: #{tpu_custom_call.1} parent=0
    _
  %s9 = ssub.s32 1, %s7
  %s10 = scalar_select 0, %s9, %s7
  $region1: #{tpu_custom_call.1} parent=0
    #allocation3 [shape = 'u8[8192]{0}', space=vmem, size = 0x2000, scoped, tag = 'input window, operand 0']
    #allocation4 [shape = 's32[2]{0}', space=sflag, size = 0x8, scoped, tag = 'scoped memory for tpu_custom_call.1']
    #allocation5 [shape = 's32[2]{0}', space=sflag, size = 0x8, scoped, tag = 'scoped memory for tpu_custom_call.1']
    #allocation6 [shape = 'u8[16384]{0}', space=vmem, size = 0x4000, scoped, tag = 'input window, operand 1, single buffered']
    #allocation7 [shape = 's32[1]{0}', space=sflag, size = 0x4, scoped, tag = 'scoped memory for tpu_custom_call.1']
    #allocation8 [shape = 'u8[8192]{0}', space=vmem, size = 0x2000, scoped, tag = 'output window, operand 0']
    #allocation9 [shape = 'u8[8192]{0}', space=vmem, size = 0x2000, scoped, tag = 'output window, operand 1']
    #allocation10 [shape = 's32[2]{0}', space=sflag, size = 0x8, scoped, tag = 'scoped memory for tpu_custom_call.1']
    #allocation11 [shape = 'u8[8192]{0}', space=vmem, size = 0x2000, scoped, tag = 'output window, operand 2']
    %11 = vsyncpa [#allocation4], 0
    %s12 = scalar_lea.sflag [#allocation4], 1
    %13 = vsyncpa %s12, 0
    %14 = vsyncpa [#allocation7], 0
    %15 = vsyncpa [#allocation5], 0
    %s16 = scalar_lea.sflag [#allocation5], 1
    %17 = vsyncpa %s16, 0
    %18 = vsyncpa [#allocation10], 0
    %s19 = scalar_lea.sflag [#allocation10], 1
    %20 = vsyncpa %s19, 0
    loop: start=0, step=1, limit=4
    $region2: #{tpu_custom_call.1} parent=1 // loop_pre_header
      _
    $region3: #{tpu_custom_call.1} parent=1 // loop_header
      %s22 = sphi 0, %s26
      %p23 = scmp.ge.s32.totalorder %s22, 4
      %s29 = sphi 0, %s48
      %s30 = sphi 0, %s44
      %s31 = sphi 0, %s40
      %s32 = sphi 0, %s29
      %s33 = sphi 0, %s30
      %s34 = sphi 0, %s31
      %s35 = sphi 0, %s32
      %s36 = sphi 0, %s33
      %s37 = sphi 0, %s34
      %s55 = sphi 0, %s57
      %s58 = sphi 0, %s55
      %s59 = sphi 0, %s58
      %s75 = sphi 0, %s59
      %s81 = sphi 0, %s83
      %s84 = sphi 0, %s81
      %s85 = sphi 0, %s84
      %s101 = sphi 0, %s85
      %s105 = sphi 0, %s105
      %s107 = sphi 0, %s105
      %s108 = sphi 0, %s107
      %s122 = sphi 0, %s108
      %s130 = sphi 0, %s132
      %s133 = sphi 0, %s130
      %s134 = sphi 0, %s133
      %s150 = sphi 0, %s134
      %s158 = sphi 0, %s160
      %s161 = sphi 0, %s158
      %s162 = sphi 0, %s161
      %s178 = sphi 0, %s162
      %s186 = sphi 0, %s188
      %s189 = sphi 0, %s186
      %s190 = sphi 0, %s189
      %s206 = sphi 0, %s190
    $region4: #{tpu_custom_call.1} parent=1 // loop_header_branch
      %25 = sbr.rel (%p23) target = $region8
    $region5: #{tpu_custom_call.1} parent=1 // loop_body
      %s27 = ssub.s32 %s22, 1
      %s28 = ssub.s32 %s22, 2
      %s38 = sadd.s32 1, %s31
      %p39 = scmp.ge.s32.totalorder %s38, 1
      %s40 = scalar_select %p39, 0, %s38
      %s41 = sadd.s32 1, %s30
      %s42 = scalar_select %p39, %s41, %s30
      %p43 = scmp.ge.s32.totalorder %s42, 1
      %s44 = scalar_select %p43, 0, %s42
      %s45 = sadd.s32 1, %s29
      %s46 = scalar_select %p43, %s45, %s29
      %p47 = scmp.ge.s32.totalorder %s46, 2
      %s48 = scalar_select %p47, 0, %s46
      %s49 = ssub.s32 %s29, %s48
      %s50 = ssub.s32 %s30, %s44
      %s51 = sor.u32 %s49, %s50
      %s52 = ssub.s32 %s31, %s40
      %s53 = sor.u32 %s51, %s52
      %p54 = scmp.eq.s32.totalorder %s53, 0
      %s56 = sadd.s32 %s55, 1
      %s57 = scalar_select %p54, %s55, %s56
      %p60 = pneg %p54
      %p61 = scmp.eq.s32.totalorder %s22, 1
      %p62 = por %p60, %p61
      %p63 = scmp.ne.s32.totalorder %s55, %s58
      %p64 = scmp.eq.s32.totalorder %s22, 0
      %p65 = por %p63, %p64
      %p66 = scmp.ne.s32.totalorder %s55, %s58
      %p67 = scmp.eq.s32.totalorder %s27, 1
      %p68 = por %p66, %p67
      %p69 = scmp.ne.s32.totalorder %s58, %s59
      %p70 = scmp.eq.s32.totalorder %s27, 0
      %p71 = por %p69, %p70
      %p72 = scmp.ne.s32.totalorder %s58, %s59
      %p73 = scmp.eq.s32.totalorder %s28, 1
      %p74 = por %p72, %p73
      %p76 = scmp.ne.s32.totalorder %s59, %s75
      %p77 = scmp.eq.s32.totalorder %s28, 0
      %p78 = por %p76, %p77
      %s79 = ssub.s32 %s31, %s40
      %p80 = scmp.eq.s32.totalorder %s79, 0
      %s82 = sadd.s32 %s81, 1
      %s83 = scalar_select %p80, %s81, %s82
      %p86 = pneg %p80
      %p87 = scmp.eq.s32.totalorder %s22, 1
      %p88 = por %p86, %p87
      %p89 = scmp.ne.s32.totalorder %s81, %s84
      %p90 = scmp.eq.s32.totalorder %s22, 0
      %p91 = por %p89, %p90
      %p92 = scmp.ne.s32.totalorder %s81, %s84
      %p93 = scmp.eq.s32.totalorder %s27, 1
      %p94 = por %p92, %p93
      %p95 = scmp.ne.s32.totalorder %s84, %s85
      %p96 = scmp.eq.s32.totalorder %s27, 0
      %p97 = por %p95, %p96
      %p98 = scmp.ne.s32.totalorder %s84, %s85
      %p99 = scmp.eq.s32.totalorder %s28, 1
      %p100 = por %p98, %p99
      %p102 = scmp.ne.s32.totalorder %s85, %s101
      %p103 = scmp.eq.s32.totalorder %s28, 0
      %p104 = por %p102, %p103
      %s106 = sadd.s32 %s105, 1
      %p109 = scmp.eq.s32.totalorder %s22, 1
      %p110 = scmp.ne.s32.totalorder %s105, %s107
      %p111 = scmp.eq.s32.totalorder %s22, 0
      %p112 = por %p110, %p111
      %p113 = scmp.ne.s32.totalorder %s105, %s107
      %p114 = scmp.eq.s32.totalorder %s27, 1
      %p115 = por %p113, %p114
      %p116 = scmp.ne.s32.totalorder %s107, %s108
      %p117 = scmp.eq.s32.totalorder %s27, 0
      %p118 = por %p116, %p117
      %p119 = scmp.ne.s32.totalorder %s107, %s108
      %p120 = scmp.eq.s32.totalorder %s28, 1
      %p121 = por %p119, %p120
      %p123 = scmp.ne.s32.totalorder %s108, %s122
      %p124 = scmp.eq.s32.totalorder %s28, 0
      %p125 = por %p123, %p124
      %s126 = ssub.s32 %s29, %s48
      %s127 = ssub.s32 %s30, %s44
      %s128 = sor.u32 %s126, %s127
      %p129 = scmp.eq.s32.totalorder %s128, 0
      %s131 = sadd.s32 %s130, 1
      %s132 = scalar_select %p129, %s130, %s131
      %p135 = pneg %p129
      %p136 = scmp.eq.s32.totalorder %s22, 1
      %p137 = por %p135, %p136
      %p138 = scmp.ne.s32.totalorder %s130, %s133
      %p139 = scmp.eq.s32.totalorder %s22, 0
      %p140 = por %p138, %p139
      %p141 = scmp.ne.s32.totalorder %s130, %s133
      %p142 = scmp.eq.s32.totalorder %s27, 1
      %p143 = por %p141, %p142
      %p144 = scmp.ne.s32.totalorder %s133, %s134
      %p145 = scmp.eq.s32.totalorder %s27, 0
      %p146 = por %p144, %p145
      %p147 = scmp.ne.s32.totalorder %s133, %s134
      %p148 = scmp.eq.s32.totalorder %s28, 1
      %p149 = por %p147, %p148
      %p151 = scmp.ne.s32.totalorder %s134, %s150
      %p152 = scmp.eq.s32.totalorder %s28, 0
      %p153 = por %p151, %p152
      %s154 = ssub.s32 %s29, %s48
      %s155 = ssub.s32 %s30, %s44
      %s156 = sor.u32 %s154, %s155
      %p157 = scmp.eq.s32.totalorder %s156, 0
      %s159 = sadd.s32 %s158, 1
      %s160 = scalar_select %p157, %s158, %s159
      %p163 = pneg %p157
      %p164 = scmp.eq.s32.totalorder %s22, 1
      %p165 = por %p163, %p164
      %p166 = scmp.ne.s32.totalorder %s158, %s161
      %p167 = scmp.eq.s32.totalorder %s22, 0
      %p168 = por %p166, %p167
      %p169 = scmp.ne.s32.totalorder %s158, %s161
      %p170 = scmp.eq.s32.totalorder %s27, 1
      %p171 = por %p169, %p170
      %p172 = scmp.ne.s32.totalorder %s161, %s162
      %p173 = scmp.eq.s32.totalorder %s27, 0
      %p174 = por %p172, %p173
      %p175 = scmp.ne.s32.totalorder %s161, %s162
      %p176 = scmp.eq.s32.totalorder %s28, 1
      %p177 = por %p175, %p176
      %p179 = scmp.ne.s32.totalorder %s162, %s178
      %p180 = scmp.eq.s32.totalorder %s28, 0
      %p181 = por %p179, %p180
      %s182 = ssub.s32 %s29, %s48
      %s183 = ssub.s32 %s30, %s44
      %s184 = sor.u32 %s182, %s183
      %p185 = scmp.eq.s32.totalorder %s184, 0
      %s187 = sadd.s32 %s186, 1
      %s188 = scalar_select %p185, %s186, %s187
      %p191 = pneg %p185
      %p192 = scmp.eq.s32.totalorder %s22, 1
      %p193 = por %p191, %p192
      %p194 = scmp.ne.s32.totalorder %s186, %s189
      %p195 = scmp.eq.s32.totalorder %s22, 0
      %p196 = por %p194, %p195
      %p197 = scmp.ne.s32.totalorder %s186, %s189
      %p198 = scmp.eq.s32.totalorder %s27, 1
      %p199 = por %p197, %p198
      %p200 = scmp.ne.s32.totalorder %s189, %s190
      %p201 = scmp.eq.s32.totalorder %s27, 0
      %p202 = por %p200, %p201
      %p203 = scmp.ne.s32.totalorder %s189, %s190
      %p204 = scmp.eq.s32.totalorder %s28, 1
      %p205 = por %p203, %p204
      %p207 = scmp.ne.s32.totalorder %s190, %s206
      %p208 = scmp.eq.s32.totalorder %s28, 0
      %p209 = por %p207, %p208
      %p210 = scmp.le.s32.totalorder 1, %s22
      %p211 = scmp.lt.s32.totalorder %s22, 3
      %p212 = pnand %p210, %p211
      %p213 = pneg %p212
      // Predicated region
      $region9: #{tpu_custom_call.1} parent=5 // pred_check
        _
      $region10: #{tpu_custom_call.1} parent=5 // pred_check_branch
        %215 = sbr.rel (%p212) target = $region12
      $region11: #{tpu_custom_call.1} parent=5 // pred_region
        %s216 = ssub.s32 %s22, 1
        // Predicated region
        $region13: #{tpu_custom_call.1} parent=11 // pred_check
          %p217 = pneg %p97
        $region14: #{tpu_custom_call.1} parent=11 // pred_check_branch
          %219 = sbr.rel (%p217) target = $region16
        $region15: #{tpu_custom_call.1} parent=11 // pred_region
          %s220 = smul.u32 4, %s34
          %222 = vsyncadd [#allocation7], 0
          %s223 = smul.addr %s220, 8
          %s224 = scalar_lea.hbm %s1, %s223
          %s225 = sshll.u32 %s224, 4
          %s226 = int_to_ptr.hbm [resolvable:$true] %s225
          %s227 = sshll.u32 [#allocation6], 4
          %s228 = int_to_ptr.vmem [resolvable:$true] %s227
          %233 = dma.hbm_to_vmem [thread:$0]  %s226, 512, %s228, [#allocation7], 128, 128, 8
        $region16: #{tpu_custom_call.1} parent=11 // pred_fallthru
          _
        // Predicated region
        $region17: #{tpu_custom_call.1} parent=11 // pred_check
          %p234 = pneg %p118
        $region18: #{tpu_custom_call.1} parent=11 // pred_check_branch
          %236 = sbr.rel (%p234) target = $region20
        $region19: #{tpu_custom_call.1} parent=11 // pred_region
          _
        $region20: #{tpu_custom_call.1} parent=11 // pred_fallthru
          _
      $region12: #{tpu_custom_call.1} parent=5 // pred_fallthru
        _
      %p237 = scmp.lt.s32.totalorder %s22, 2
      // Predicated region
      $region21: #{tpu_custom_call.1} parent=5 // pred_check
        %p238 = pneg %p237
      $region22: #{tpu_custom_call.1} parent=5 // pred_check_branch
        %240 = sbr.rel (%p238) target = $region24
      $region23: #{tpu_custom_call.1} parent=5 // pred_region
        // Predicated region
        $region25: #{tpu_custom_call.1} parent=23 // pred_check
          %p241 = pneg %p65
        $region26: #{tpu_custom_call.1} parent=23 // pred_check_branch
          %243 = sbr.rel (%p241) target = $region28
        $region27: #{tpu_custom_call.1} parent=23 // pred_region
          %s244 = sand.u32 %s55, 1
          %s245 = scalar_lea.sflag [#allocation4], %s244
          %s246 = sand.u32 %s55, 1
          %s247 = smul.addr %s246, 8
          %s248 = scalar_lea.vmem [#allocation3], %s247
          %250 = vsyncadd %s245, 0
          %s251 = sadd.s32 %s31, %s30
          %s252 = sadd.s32 %s251, %s29
          %s253 = smul.addr %s252, 8
          %s254 = scalar_lea.hbm %s0, %s253
          %s256 = sshll.u32 %s254, 4
          %s257 = int_to_ptr.hbm [resolvable:$true] %s256
          %s258 = sshll.u32 %s248, 4
          %s259 = int_to_ptr.vmem [resolvable:$true] %s258
          %261 = dma.hbm_to_vmem [thread:$0]  %s257, 128, %s259, %s245
        $region28: #{tpu_custom_call.1} parent=23 // pred_fallthru
          _
      $region24: #{tpu_custom_call.1} parent=5 // pred_fallthru
        _
      %p262 = scmp.le.s32.totalorder 1, %s22
      %p263 = scmp.lt.s32.totalorder %s22, 3
      %p264 = pnand %p262, %p263
      %p265 = pneg %p264
      // Predicated region
      $region29: #{tpu_custom_call.1} parent=5 // pred_check
        _
      $region30: #{tpu_custom_call.1} parent=5 // pred_check_branch
        %267 = sbr.rel (%p264) target = $region32
      $region31: #{tpu_custom_call.1} parent=5 // pred_region
        %s268 = ssub.s32 %s22, 1
        %s269 = sand.u32 %s58, 1
        %s270 = scalar_lea.sflag [#allocation4], %s269
        %s271 = sand.u32 %s58, 1
        %s272 = smul.addr %s271, 8
        %s273 = scalar_lea.vmem [#allocation3], %s272
        // Predicated region
        $region33: #{tpu_custom_call.1} parent=31 // pred_check
          %p274 = pneg %p71
        $region34: #{tpu_custom_call.1} parent=31 // pred_check_branch
          %276 = sbr.rel (%p274) target = $region36
        $region35: #{tpu_custom_call.1} parent=31 // pred_region
          %278 = dma.done %s270, 128
        $region36: #{tpu_custom_call.1} parent=31 // pred_fallthru
          _
        // Predicated region
        $region37: #{tpu_custom_call.1} parent=31 // pred_check
          %p279 = pneg %p97
        $region38: #{tpu_custom_call.1} parent=31 // pred_check_branch
          %281 = sbr.rel (%p279) target = $region40
        $region39: #{tpu_custom_call.1} parent=31 // pred_region
          %283 = dma.done [#allocation7], 512
        $region40: #{tpu_custom_call.1} parent=31 // pred_fallthru
          _
        %s284 = sand.u32 %s58, 1
        %s285 = scalar_lea.sflag [#allocation4], %s284
        %s286 = sand.u32 %s58, 1
        %s287 = smul.addr %s286, 8
        %s288 = scalar_lea.vmem [#allocation3], %s287
        %p289 = pneg %p71
        %p290 = pneg %p68
        %p291 = pneg %p97
        %p292 = pneg %p94
        %p293 = pneg %p118
        %p294 = pneg %p115
        %p295 = pneg %p146
        %p296 = pneg %p143
        %s297 = sand.u32 %s133, 1
        %s298 = scalar_lea.sflag [#allocation5], %s297
        %s299 = sand.u32 %s133, 1
        %s300 = smul.addr %s299, 8
        %s301 = scalar_lea.vmem [#allocation8], %s300
        %p302 = pneg %p174
        %p303 = pneg %p171
        %s304 = sand.u32 %s27, 1
        %s305 = scalar_lea.sflag [#allocation10], %s304
        %s306 = sand.u32 %s161, 1
        %s307 = smul.addr %s306, 8
        %s308 = scalar_lea.vmem [#allocation9], %s307
        %p309 = pneg %p202
        %p310 = pneg %p199
        %s311 = sand.u32 %s27, 1
        %s312 = scalar_lea.sflag [#allocation10], %s311
        %s313 = sand.u32 %s189, 1
        %s314 = smul.addr %s313, 8
        %s315 = scalar_lea.vmem [#allocation11], %s314
        %s316 = smul.u32 4, %s34
        %p317 = scmp.eq.s32.totalorder %s34, 0
        // Predicated region
        $region41: #{tpu_custom_call.1} parent=31 // pred_check
          %p318 = pneg %p317
        $region42: #{tpu_custom_call.1} parent=31 // pred_check_branch
          %320 = sbr.rel (%p318) target = $region44
        $region43: #{tpu_custom_call.1} parent=31 // pred_region
          %vm321 = vcmask 785408
          %322 = vst.msk [vmem:[#allocation2] sm:$0xff] %vm321, 0.0
        $region44: #{tpu_custom_call.1} parent=31 // pred_fallthru
          _
        %v323 = vld [vmem:[%s273] sm:$0xff]
        %v324 = vld [vmem:[#allocation2] sm:$0xff]
        %v325 = vld [vmem:[#allocation6] sm:$0xff]
        %v326 = vld [vmem:[#allocation6 + $0x8] sm:$0xff]
        %v327 = vld [vmem:[#allocation6 + $0x10] sm:$0xff]
        %v328 = vld [vmem:[#allocation6 + $0x18] sm:$0xff]
        %vm329 = vcmask 261120
        %v331 = vsel %vm329, %v323, 0
        %333 = vmatpush.msra.mxu0 0.0
        %334 = vmatpush.msra.mxu0 0.0
        %335 = vmatpush.msra.mxu0 0.0
        %336 = vmatpush.msra.mxu0 0.0
        %337 = vmatpush.msra.mxu0 0.0
        %338 = vmatpush.msra.mxu0 0.0
        %339 = vmatpush.msra.mxu0 0.0
        %340 = vmatpush.msra.mxu0 0.0
        %341 = vmatpush.msra.mxu0 0.0
        %342 = vmatpush.msra.mxu0 0.0
        %343 = vmatpush.msra.mxu0 0.0
        %344 = vmatpush.msra.mxu0 0.0
        %345 = vmatpush.msra.mxu0 %v328
        %346 = vmatpush.msra.mxu0 %v327
        %347 = vmatpush.msra.mxu0 %v326
        %348 = vmatpush.msra.mxu0 %v325
        %349 = vmatmul.f32.gmra.mxu0 %v331
        %v350 = vpop.f32.mrf.mxu0
        %v351 = vadd.f32 0.0, %v350
        %352 = vdwg.mxu0
        %v353 = vadd.f32 %v324, %v351
        %vm354 = vcmask 785408
        %355 = vst.msk [vmem:[#allocation2] sm:$0xff] %vm354, %v353
        // Predicated region
        $region45: #{tpu_custom_call.1} parent=31 // pred_check
          %p356 = pneg %p317
        $region46: #{tpu_custom_call.1} parent=31 // pred_check_branch
          %358 = sbr.rel (%p356) target = $region48
        $region47: #{tpu_custom_call.1} parent=31 // pred_region
          %v359 = vld [vmem:[#allocation2] sm:$0xff]
          %v360 = vld [vmem:[%s2] sm:$0x1]
          %v362 = vperm.slane %v360, 0
          %v364 = vadd.f32 %v359, %v362
          %365 = vst.msk [vmem:[%s301] sm:$0xff] %vm329, %v364
          %367 = vrot.lane.b32.xlu0 %v364, 96
          %v368 = vpop.permute.xlu0 %367
          %370 = vst.msk [vmem:[%s308] sm:$0xff] %vm329, %v368
          %371 = vrot.lane.b32.xlu0 %v364, 64
          %v372 = vpop.permute.xlu0 %371
          %374 = vst.msk [vmem:[%s315] sm:$0xff] %vm329, %v372
        $region48: #{tpu_custom_call.1} parent=31 // pred_fallthru
          _
        %s375 = sand.u32 %s133, 1
        %s376 = scalar_lea.sflag [#allocation5], %s375
        %s377 = sand.u32 %s133, 1
        %s378 = smul.addr %s377, 8
        %s379 = scalar_lea.vmem [#allocation8], %s378
        %s380 = sand.u32 %s27, 1
        %s381 = scalar_lea.sflag [#allocation10], %s380
        %s382 = sand.u32 %s161, 1
        %s383 = smul.addr %s382, 8
        %s384 = scalar_lea.vmem [#allocation9], %s383
        %s385 = sand.u32 %s27, 1
        %s386 = scalar_lea.sflag [#allocation10], %s385
        %s387 = sand.u32 %s189, 1
        %s388 = smul.addr %s387, 8
        %s389 = scalar_lea.vmem [#allocation11], %s388
        // Predicated region
        $region49: #{tpu_custom_call.1} parent=31 // pred_check
          %p390 = pneg %p143
        $region50: #{tpu_custom_call.1} parent=31 // pred_check_branch
          %392 = sbr.rel (%p390) target = $region52
        $region51: #{tpu_custom_call.1} parent=31 // pred_region
          %394 = vsyncadd %s376, 0
          %s395 = sadd.s32 %s33, %s32
          %s396 = smul.addr %s395, 8
          %s397 = scalar_lea.hbm %s3, %s396
          %s399 = sshll.u32 %s379, 4
          %s400 = int_to_ptr.vmem [resolvable:$true] %s399
          %s401 = sshll.u32 %s397, 4
          %s402 = int_to_ptr.hbm [resolvable:$true] %s401
          %404 = dma.vmem_to_hbm [thread:$0]  %s400, 128, %s402, %s376
        $region52: #{tpu_custom_call.1} parent=31 // pred_fallthru
          _
        // Predicated region
        $region53: #{tpu_custom_call.1} parent=31 // pred_check
          %p405 = pneg %p171
        $region54: #{tpu_custom_call.1} parent=31 // pred_check_branch
          %407 = sbr.rel (%p405) target = $region56
        $region55: #{tpu_custom_call.1} parent=31 // pred_region
          %409 = vsyncadd %s381, 0
          %s410 = sadd.s32 %s33, %s32
          %s411 = smul.addr %s410, 8
          %s412 = scalar_lea.hbm %s4, %s411
          %s414 = sshll.u32 %s384, 4
          %s415 = int_to_ptr.vmem [resolvable:$true] %s414
          %s416 = sshll.u32 %s412, 4
          %s417 = int_to_ptr.hbm [resolvable:$true] %s416
          %419 = dma.vmem_to_hbm [thread:$0]  %s415, 128, %s417, %s381
        $region56: #{tpu_custom_call.1} parent=31 // pred_fallthru
          _
        // Predicated region
        $region57: #{tpu_custom_call.1} parent=31 // pred_check
          %p420 = pneg %p199
        $region58: #{tpu_custom_call.1} parent=31 // pred_check_branch
          %422 = sbr.rel (%p420) target = $region60
        $region59: #{tpu_custom_call.1} parent=31 // pred_region
          %424 = vsyncadd %s386, 0
          %s425 = sadd.s32 %s33, %s32
          %s426 = smul.addr %s425, 8
          %s427 = scalar_lea.hbm %s5, %s426
          %s429 = sshll.u32 %s389, 4
          %s430 = int_to_ptr.vmem [resolvable:$true] %s429
          %s431 = sshll.u32 %s427, 4
          %s432 = int_to_ptr.hbm [resolvable:$true] %s431
          %434 = dma.vmem_to_hbm [thread:$0]  %s430, 128, %s432, %s386
        $region60: #{tpu_custom_call.1} parent=31 // pred_fallthru
          _
      $region32: #{tpu_custom_call.1} parent=5 // pred_fallthru
        _
      %p435 = scmp.le.s32.totalorder 2, %s22
      // Predicated region
      $region61: #{tpu_custom_call.1} parent=5 // pred_check
        %p436 = pneg %p435
      $region62: #{tpu_custom_call.1} parent=5 // pred_check_branch
        %438 = sbr.rel (%p436) target = $region64
      $region63: #{tpu_custom_call.1} parent=5 // pred_region
        %s439 = ssub.s32 %s22, 2
        // Predicated region
        $region65: #{tpu_custom_call.1} parent=63 // pred_check
          %p440 = pneg %p149
        $region66: #{tpu_custom_call.1} parent=63 // pred_check_branch
          %442 = sbr.rel (%p440) target = $region68
        $region67: #{tpu_custom_call.1} parent=63 // pred_region
          %s443 = sand.u32 %s134, 1
          %s444 = scalar_lea.sflag [#allocation5], %s443
          %s445 = sand.u32 %s134, 1
          %s446 = smul.addr %s445, 8
          %s447 = scalar_lea.vmem [#allocation8], %s446
          %449 = dma.done %s444, 128
        $region68: #{tpu_custom_call.1} parent=63 // pred_fallthru
          _
        // Predicated region
        $region69: #{tpu_custom_call.1} parent=63 // pred_check
          %p450 = pneg %p177
        $region70: #{tpu_custom_call.1} parent=63 // pred_check_branch
          %452 = sbr.rel (%p450) target = $region72
        $region71: #{tpu_custom_call.1} parent=63 // pred_region
          %s453 = sand.u32 %s28, 1
          %s454 = scalar_lea.sflag [#allocation10], %s453
          %s455 = sand.u32 %s162, 1
          %s456 = smul.addr %s455, 8
          %s457 = scalar_lea.vmem [#allocation9], %s456
          %459 = dma.done %s454, 128
        $region72: #{tpu_custom_call.1} parent=63 // pred_fallthru
          _
        // Predicated region
        $region73: #{tpu_custom_call.1} parent=63 // pred_check
          %p460 = pneg %p205
        $region74: #{tpu_custom_call.1} parent=63 // pred_check_branch
          %462 = sbr.rel (%p460) target = $region76
        $region75: #{tpu_custom_call.1} parent=63 // pred_region
          %s463 = sand.u32 %s28, 1
          %s464 = scalar_lea.sflag [#allocation10], %s463
          %s465 = sand.u32 %s190, 1
          %s466 = smul.addr %s465, 8
          %s467 = scalar_lea.vmem [#allocation11], %s466
          %469 = dma.done %s464, 128
        $region76: #{tpu_custom_call.1} parent=63 // pred_fallthru
          _
      $region64: #{tpu_custom_call.1} parent=5 // pred_fallthru
        _
    $region6: #{tpu_custom_call.1} parent=1 // loop_footer
      %s26 = sadd.s32 1, %s22
    $region7: #{tpu_custom_call.1} parent=1 // loop_footer_branch
      %21 = sbr.rel target = $region3
    $region8: #{tpu_custom_call.1} parent=1 // loop_exit
      _
    %470 = vsyncpa [#allocation4], 1
    %s471 = scalar_lea.sflag [#allocation4], 1
    %472 = vsyncpa %s471, 1
    %473 = vsyncpa [#allocation7], 1
    %474 = vsyncpa [#allocation5], 1
    %s475 = scalar_lea.sflag [#allocation5], 1
    %476 = vsyncpa %s475, 1
    %477 = vsyncpa [#allocation10], 1
    %s478 = scalar_lea.sflag [#allocation10], 1
    %479 = vsyncpa %s478, 1

</llo_original>
